<compile_context>
chip_gen: v5e
topology: v5e:2x2
jax: 0.10.0
libtpu: 0.0.40
codegen_flags: <defaults>
</compile_context>

<pallas_src>
import functools
import math

import jax
import jax.numpy as jnp
from jax import lax
from jax.experimental import pallas as pl
from jax.experimental.pallas import tpu as pltpu


def _largest_divisor_tile(n, align, cap):
    """Largest multiple of `align` that divides n and is <= cap (None if none)."""
    best = None
    t = align
    limit = min(n, cap)
    while t <= limit:
        if n % t == 0:
            best = t
        t += align
    return best


def _contrastive_kernel(zr_ref, zc_ref, out_ref, acc_ref, *, inv_t):
    j = pl.program_id(1)
    nj = pl.num_programs(1)

    @pl.when(j == 0)
    def _init():
        acc_ref[...] = jnp.zeros_like(acc_ref)

    # Operands are pre-normalized and pre-scaled by sqrt(1/T) in the wrapper,
    # so this is sim/T straight off the MXU (contract last dims, no transpose).
    s = lax.dot_general(zr_ref[...], zc_ref[...], (((1,), (1,)), ((), ())),
                        preferred_element_type=jnp.float32)          # (tr, tc)
    # Shifted exponent: sim <= 1  =>  exp(sim/T - 1/T) <= ~1 (stable for small
    # T) and the self-similarity term becomes exp(0) == 1 (removed at finalize).
    e = jnp.exp(s - inv_t)                                            # EUP

    tc = e.shape[1]
    acc = acc_ref[...]
    if tc % 128 == 0:
        # Lane-group accumulation: plain VPU adds into the lane-dense scratch,
        # no per-step cross-lane (XLU) reduction.
        for c0 in range(0, tc, 128):
            acc = acc + e[:, c0:c0 + 128]
    else:
        # Small-2B fallback (tc < 128): scratch is (tr, tc).
        acc = acc + e
    acc_ref[...] = acc

    @pl.when(j == nj - 1)
    def _finalize():
        # denom_shifted_k = sum_{j != k} exp((sim_kj - 1)/T); the "- 1.0"
        # removes the self term.  NOTE: assumes no all-zero input rows.
        denom = jnp.sum(acc_ref[...], axis=1, keepdims=True) - 1.0    # (tr, 1)
        loss_part = jnp.sum(jnp.log(denom))
        # One scalar per row block at [0, 0] of a lane-dense (8,128) tile
        # (zeros elsewhere) so the host-side reduction is a plain jnp.sum.
        r = lax.broadcasted_iota(jnp.int32, out_ref.shape, 0)
        c = lax.broadcasted_iota(jnp.int32, out_ref.shape, 1)
        out_ref[...] = jnp.where((r == 0) & (c == 0), loss_part, 0.0)


def contrastive_loss(proj_1, proj_2, temperature=0.5):
    """Returns (loss, mean_sim, mean_neg), matching ContrastiveLoss.forward."""
    assert proj_1.shape == proj_2.shape and proj_1.ndim == 2
    B, D = proj_1.shape
    # TODO(synk): support batch sizes that are not a multiple of 8 (needs row
    # padding plus masking of padded rows in the exp accumulation).
    assert B % 8 == 0, "this kernel assumes batch_size % 8 == 0"
    two_b = 2 * B
    inv_t = 1.0 / float(temperature)

    # ---- wrapper-side O(B*D) preprocessing (done exactly once) -------------
    z = jnp.concatenate(
        [proj_1.astype(jnp.float32), proj_2.astype(jnp.float32)], axis=0)
    # F.normalize(p=2, dim=1, eps=1e-12): x / max(||x||, 1e-12).
    ssq = jnp.sum(z * z, axis=1, keepdims=True)
    zn = z * lax.rsqrt(jnp.maximum(ssq, 1e-24))
    # Each positive pair appears twice in the reference (sim_ij and sim_ji).
    pos_sum = 2.0 * jnp.sum(zn[:B] * zn[B:])
    # Whole-matrix similarity sum: sum_{k,j} zn_k . zn_j = ||sum_k zn_k||^2.
    sim_sum = jnp.sum(jnp.square(jnp.sum(zn, axis=0)))

    # Fold sqrt(1/T) into both matmul operands -> MXU emits sim/T directly.
    zs = zn * jnp.float32(math.sqrt(inv_t))
    # Zero-pad the embedding dim to a lane-dense multiple of 128 (exact dots).
    d_pad = ((D + 127) // 128) * 128
    if d_pad != D:
        zs = jnp.pad(zs, ((0, 0), (0, d_pad - D)))
    # TODO(synk): a bf16 cast of zs would speed up the MXU, but it perturbs the
    # self-similarity correction by ~1e-3*exp(1/T); kept in f32 (EUP-bound).

    # ---- generation-aware tiling --------------------------------------------
    bytes_per_row = d_pad * 4
    try:
        vmem_cap = int(pltpu.get_tpu_info().vmem_capacity_bytes)
    except Exception:
        vmem_cap = 64 << 20       # v7x per-core VMEM; conservative default
    budget = min(vmem_cap // 2, 48 << 20)

    # Row tile: multiple of 8 dividing B, so n_ri = 2B/tr is even and >= 2
    # (load-balances the "parallel" row axis across v7x's two TensorCores).
    tr_cap = max(8, min(B, 512, (budget // 6) // (2 * bytes_per_row)))
    tr = _largest_divisor_tile(B, 8, tr_cap)
    n_ri = two_b // tr

    # Column tile: cover all of 2B when it fits (single inner step), else the
    # largest 256-aligned (then 128-, then 8-aligned) divisor under budget.
    per_col_row = 2 * bytes_per_row + 8 * tr     # zc double-buffer + sim/exp tiles
    col_budget_rows = max(128, (budget - 2 * tr * bytes_per_row) // per_col_row)
    if two_b <= col_budget_rows:
        tc = two_b
    else:
        tc = (_largest_divisor_tile(two_b, 256, col_budget_rows)
              or _largest_divisor_tile(two_b, 128, col_budget_rows)
              or _largest_divisor_tile(two_b, 8, col_budget_rows)
              or 8)
    n_cj = two_b // tc
    acc_w = 128 if tc % 128 == 0 else tc

    est = (2 * (tr + tc) * bytes_per_row          # double-buffered operand blocks
           + 3 * tr * tc * 4                      # sim / exp value tiles
           + tr * acc_w * 4 + 2 * 8 * 128 * 4)    # scratch + output blocks
    vmem_limit = int(min(vmem_cap * 0.9, max(2 * est, 32 << 20)))

    kernel = functools.partial(_contrastive_kernel, inv_t=inv_t)

    partials = pl.pallas_call(
        kernel,
        out_shape=jax.ShapeDtypeStruct((n_ri * 8, 128), jnp.float32),
        grid_spec=pltpu.PrefetchScalarGridSpec(
            num_scalar_prefetch=0,
            grid=(n_ri, n_cj),                          # reduction (cols) last
            in_specs=[
                pl.BlockSpec((tr, d_pad), lambda i, j: (i, 0)),   # row block
                pl.BlockSpec((tc, d_pad), lambda i, j: (j, 0)),   # col block
            ],
            out_specs=pl.BlockSpec((8, 128), lambda i, j: (i, 0)),
            scratch_shapes=[pltpu.VMEM((tr, acc_w), jnp.float32)],
        ),
        compiler_params=pltpu.CompilerParams(
            dimension_semantics=("parallel", "arbitrary"),
            vmem_limit_bytes=vmem_limit),
    )(zs, zs)

    # loss_k = log(denom_shifted_k) + 1/T - pos_k/T, summed over the 2B rows.
    log_denom_sum = jnp.sum(partials)
    loss = (log_denom_sum + two_b * inv_t - pos_sum * inv_t) / two_b
    denom_sz = float(two_b * two_b)
    mean_sim = sim_sum / denom_sz
    mean_neg = (sim_sum - two_b) / denom_sz    # trace(sim) == 2B (non-degenerate)
    return loss, mean_sim, mean_neg


def _reference(proj_1, proj_2, temperature=0.5):
    """Pure-JAX reference mirroring the PyTorch module (for a sanity check)."""
    b = proj_1.shape[0]
    z1 = proj_1 / jnp.maximum(jnp.linalg.norm(proj_1, axis=1, keepdims=True), 1e-12)
    z2 = proj_2 / jnp.maximum(jnp.linalg.norm(proj_2, axis=1, keepdims=True), 1e-12)
    z = jnp.concatenate([z1, z2], axis=0)
    norms = jnp.linalg.norm(z, axis=1, keepdims=True)
    sim = (z @ z.T) / jnp.maximum(norms * norms.T, 1e-8)
    sim_ij = jnp.diagonal(sim, offset=b)
    sim_ji = jnp.diagonal(sim, offset=-b)
    positives = jnp.concatenate([sim_ij, sim_ji], axis=0)
    mask = 1.0 - jnp.eye(2 * b, dtype=jnp.float32)
    nominator = jnp.exp(positives / temperature)
    denominator = mask * jnp.exp(sim / temperature)
    all_losses = -jnp.log(nominator / jnp.sum(denominator, axis=1))
    loss = jnp.sum(all_losses) / (2 * b)
    return loss, jnp.mean(sim), jnp.mean(sim * mask)


if __name__ == "__main__":
    B, D = 8, 32
    key = jax.random.PRNGKey(0)
    k1, k2 = jax.random.split(key)
    proj_1 = jax.random.normal(k1, (B, D), dtype=jnp.float32)
    proj_2 = jax.random.normal(k2, (B, D), dtype=jnp.float32)

    loss, mean_sim, mean_neg = jax.block_until_ready(
        contrastive_loss(proj_1, proj_2, temperature=0.5))

    ref_loss, ref_ms, ref_mn = _reference(proj_1, proj_2, temperature=0.5)
    assert jnp.allclose(loss, ref_loss, atol=1e-4, rtol=1e-4), (loss, ref_loss)
    assert jnp.allclose(mean_sim, ref_ms, atol=1e-5, rtol=1e-5), (mean_sim, ref_ms)
    assert jnp.allclose(mean_neg, ref_mn, atol=1e-5, rtol=1e-5), (mean_neg, ref_mn)

    print("KERNEL_OK")
</pallas_src>

<mosaic_0001>
module attributes {stable_mosaic.version = 11 : i64} {
  func.func @_contrastive_kernel(%arg0: i32, %arg1: i32, %arg2: memref<8x128xf32, #tpu.memory_space<vmem>>, %arg3: memref<16x128xf32, #tpu.memory_space<vmem>>, %arg4: memref<8x128xf32, #tpu.memory_space<vmem>>, %arg5: memref<8x16xf32, #tpu.memory_space<vmem>>) attributes {dimension_semantics = [#tpu.dimension_semantics<parallel>, #tpu.dimension_semantics<arbitrary>], iteration_bounds = array<i64: 2, 1>, scalar_prefetch = 0 : i64, scratch_operands = 1 : i64, tpu.core_type = #tpu.core_type<tc>, window_params = [{transform_indices = @transform_0, window_bounds = array<i64: 8, 128>}, {transform_indices = @transform_1, window_bounds = array<i64: 16, 128>}, {transform_indices = @transform_2, window_bounds = array<i64: 8, 128>}]} {
    %c0_i32 = arith.constant 0 : i32
    %0 = arith.cmpi eq, %arg1, %c0_i32 : i32
    %1 = arith.extui %0 : i1 to i32
    %c0_i32_0 = arith.constant 0 : i32
    %2 = arith.cmpi ne, %1, %c0_i32_0 : i32
    scf.if %2 {
      %cst_11 = arith.constant 0.000000e+00 : f32
      %15 = vector.broadcast %cst_11 : f32 to vector<8x16xf32>
      %c0_12 = arith.constant 0 : index
      %c0_13 = arith.constant 0 : index
      %16 = vector.load %arg5[%c0_12, %c0_13] : memref<8x16xf32, #tpu.memory_space<vmem>>, vector<8x16xf32>
      tpu.vector_store %arg5[%c0_12, %c0_13], %15 {strides = array<i32>} : memref<8x16xf32, #tpu.memory_space<vmem>>, vector<8x16xf32>,
    } else {
    }
    %c0 = arith.constant 0 : index
    %c0_1 = arith.constant 0 : index
    %3 = vector.load %arg2[%c0, %c0_1] : memref<8x128xf32, #tpu.memory_space<vmem>>, vector<8x128xf32>
    %c0_2 = arith.constant 0 : index
    %c0_3 = arith.constant 0 : index
    %4 = vector.load %arg3[%c0_2, %c0_3] : memref<16x128xf32, #tpu.memory_space<vmem>>, vector<16x128xf32>
    %cst = arith.constant dense<0.000000e+00> : vector<8x16xf32>
    %5 = tpu.matmul %3, %4, %cst {dimension_numbers = #tpu.dot_dimension_numbers<[1], [1], [0], [0], [0, 0, 1, 0], [], []>} : vector<8x128xf32>, vector<16x128xf32>, vector<8x16xf32> -> vector<8x16xf32>
    %cst_4 = arith.constant 2.000000e+00 : f32
    %6 = vector.broadcast %cst_4 : f32 to vector<8x16xf32>
    %7 = arith.subf %5, %6 : vector<8x16xf32>
    %8 = math.exp %7 : vector<8x16xf32>
    %c0_5 = arith.constant 0 : index
    %c0_6 = arith.constant 0 : index
    %9 = vector.load %arg5[%c0_5, %c0_6] : memref<8x16xf32, #tpu.memory_space<vmem>>, vector<8x16xf32>
    %10 = arith.addf %9, %8 : vector<8x16xf32>
    %c0_7 = arith.constant 0 : index
    %c0_8 = arith.constant 0 : index
    %11 = vector.load %arg5[%c0_7, %c0_8] : memref<8x16xf32, #tpu.memory_space<vmem>>, vector<8x16xf32>
    tpu.vector_store %arg5[%c0_7, %c0_8], %10 {strides = array<i32>} : memref<8x16xf32, #tpu.memory_space<vmem>>, vector<8x16xf32>,
    %c0_i32_9 = arith.constant 0 : i32
    %12 = arith.cmpi eq, %arg1, %c0_i32_9 : i32
    %13 = arith.extui %12 : i1 to i32
    %c0_i32_10 = arith.constant 0 : i32
    %14 = arith.cmpi ne, %13, %c0_i32_10 : i32
    scf.if %14 {
      %c0_11 = arith.constant 0 : index
      %c0_12 = arith.constant 0 : index
      %15 = vector.load %arg5[%c0_11, %c0_12] : memref<8x16xf32, #tpu.memory_space<vmem>>, vector<8x16xf32>
      %cst_13 = arith.constant dense<0.000000e+00> : vector<8xf32>
      %16 = vector.multi_reduction <add>, %15, %cst_13 [1] : vector<8x16xf32> to vector<8xf32>
      %17 = vector.shape_cast %16 : vector<8xf32> to vector<8x1xf32>
      %cst_14 = arith.constant 1.000000e+00 : f32
      %18 = vector.broadcast %cst_14 : f32 to vector<8x1xf32>
      %19 = arith.subf %17, %18 : vector<8x1xf32>
      %20 = math.log %19 : vector<8x1xf32>
      %21 = vector.shape_cast %20 : vector<8x1xf32> to vector<1x8x1xf32>
      %cst_15 = arith.constant dense<0.000000e+00> : vector<1xf32>
      %22 = vector.multi_reduction <add>, %21, %cst_15 [1, 2] : vector<1x8x1xf32> to vector<1xf32>
      %23 = vector.shape_cast %22 : vector<1xf32> to vector<1x1x1xf32>
      %24 = vector.extract %23[0, 0, 0] : f32 from vector<1x1x1xf32>
      %25 = tpu.iota {dimensions = array<i32: 0>} : vector<8x128xi32>
      %26 = tpu.iota {dimensions = array<i32: 1>} : vector<8x128xi32>
      %c0_i32_16 = arith.constant 0 : i32
      %27 = vector.broadcast %c0_i32_16 : i32 to vector<8x128xi32>
      %28 = arith.cmpi eq, %25, %27 : vector<8x128xi32>
      %c0_i32_17 = arith.constant 0 : i32
      %29 = vector.broadcast %c0_i32_17 : i32 to vector<8x128xi32>
      %30 = arith.cmpi eq, %26, %29 : vector<8x128xi32>
      %31 = arith.andi %28, %30 : vector<8x128xi1>
      %cst_18 = arith.constant 0.000000e+00 : f32
      %32 = vector.broadcast %24 : f32 to vector<8x128xf32>
      %33 = vector.broadcast %cst_18 : f32 to vector<8x128xf32>
      %34 = arith.select %31, %32, %33 : vector<8x128xi1>, vector<8x128xf32>
      %c0_19 = arith.constant 0 : index
      %c0_20 = arith.constant 0 : index
      %35 = vector.load %arg4[%c0_19, %c0_20] : memref<8x128xf32, #tpu.memory_space<vmem>>, vector<8x128xf32>
      tpu.vector_store %arg4[%c0_19, %c0_20], %34 {strides = array<i32>} : memref<8x128xf32, #tpu.memory_space<vmem>>, vector<8x128xf32>,
    } else {
    }
    return
  }
  func.func @transform_0(%arg0: i32, %arg1: i32) -> (i32, i32) {
    %c0_i32 = arith.constant 0 : i32
    %c0_i32_0 = arith.constant 0 : i32
    return %arg0, %c0_i32 : i32, i32
  }
  func.func @transform_1(%arg0: i32, %arg1: i32) -> (i32, i32) {
    %c0_i32 = arith.constant 0 : i32
    %c0_i32_0 = arith.constant 0 : i32
    return %arg1, %c0_i32 : i32, i32
  }
  func.func @transform_2(%arg0: i32, %arg1: i32) -> (i32, i32) {
    %c0_i32 = arith.constant 0 : i32
    %c0_i32_0 = arith.constant 0 : i32
    return %arg0, %c0_i32 : i32, i32
  }
}

</mosaic_0001>

<llo_original>
// kernel: tpu_custom_call.1
$region0: #{tpu_custom_call.1}
  #allocation0 [shape = 'u32[]', space=smem, size = 0x4, offset = 0x4, fixed_abs, tag = 'smem constant byte address 0x4 - core index']
  #allocation1 [shape = 'u32[72,128]{1,0:T(1,128)}', space=vmem, size = 0x9000, scoped, tag = 'internal scratch']
  #allocation2 [shape = 'f32[8,16]{1,0:T(8,128)}', space=vmem, size = 0x1000, scoped, tag = 'scratch operand']
  %s0 = inlined_call_operand.hbm [shape: f32[16,128], index: 0, kind: input, shape index: {}]
  %s1 = inlined_call_operand.hbm [shape: f32[16,128], index: 1, kind: input, shape index: {}]
  %s2 = inlined_call_operand.hbm [shape: f32[16,128], index: 2, kind: output, shape index: {}]
  %s3 = sld [smem:[#allocation0]]
  $region57: #{tpu_custom_call.1} parent=0
    _
  %s5 = ssub.s32 1, %s3
  %s6 = scalar_select 0, %s5, %s3
  $region1: #{tpu_custom_call.1} parent=0
    #allocation3 [shape = 'u8[8192]{0}', space=vmem, size = 0x2000, scoped, tag = 'input window, operand 0']
    #allocation4 [shape = 's32[2]{0}', space=sflag, size = 0x8, scoped, tag = 'scoped memory for tpu_custom_call.1']
    #allocation5 [shape = 's32[2]{0}', space=sflag, size = 0x8, scoped, tag = 'scoped memory for tpu_custom_call.1']
    #allocation6 [shape = 'u8[8192]{0}', space=vmem, size = 0x2000, scoped, tag = 'input window, operand 1, single buffered']
    #allocation7 [shape = 's32[1]{0}', space=sflag, size = 0x4, scoped, tag = 'scoped memory for tpu_custom_call.1']
    #allocation8 [shape = 'u8[8192]{0}', space=vmem, size = 0x2000, scoped, tag = 'output window, operand 0']
    %7 = vsyncpa [#allocation4], 0
    %s8 = scalar_lea.sflag [#allocation4], 1
    %9 = vsyncpa %s8, 0
    %10 = vsyncpa [#allocation7], 0
    %11 = vsyncpa [#allocation5], 0
    %s12 = scalar_lea.sflag [#allocation5], 1
    %13 = vsyncpa %s12, 0
    loop: start=0, step=1, limit=4
    $region2: #{tpu_custom_call.1} parent=1 // loop_pre_header
      _
    $region3: #{tpu_custom_call.1} parent=1 // loop_header
      %s15 = sphi 0, %s19
      %p16 = scmp.ge.s32.totalorder %s15, 4
      %s22 = sphi 0, %s34
      %s23 = sphi 0, %s30
      %s24 = sphi 0, %s22
      %s25 = sphi 0, %s23
      %s26 = sphi 0, %s24
      %s27 = sphi 0, %s25
      %s37 = sphi 0, %s39
      %s40 = sphi 0, %s37
      %s41 = sphi 0, %s40
      %s57 = sphi 0, %s41
      %s63 = sphi 0, %s65
      %s66 = sphi 0, %s63
      %s67 = sphi 0, %s66
      %s83 = sphi 0, %s67
      %s89 = sphi 0, %s91
      %s92 = sphi 0, %s89
      %s93 = sphi 0, %s92
      %s109 = sphi 0, %s93
    $region4: #{tpu_custom_call.1} parent=1 // loop_header_branch
      %18 = sbr.rel (%p16) target = $region8
    $region5: #{tpu_custom_call.1} parent=1 // loop_body
      %s20 = ssub.s32 %s15, 1
      %s21 = ssub.s32 %s15, 2
      %s28 = sadd.s32 1, %s23
      %p29 = scmp.ge.s32.totalorder %s28, 1
      %s30 = scalar_select %p29, 0, %s28
      %s31 = sadd.s32 1, %s22
      %s32 = scalar_select %p29, %s31, %s22
      %p33 = scmp.ge.s32.totalorder %s32, 2
      %s34 = scalar_select %p33, 0, %s32
      %s35 = ssub.s32 %s22, %s34
      %p36 = scmp.eq.s32.totalorder %s35, 0
      %s38 = sadd.s32 %s37, 1
      %s39 = scalar_select %p36, %s37, %s38
      %p42 = pneg %p36
      %p43 = scmp.eq.s32.totalorder %s15, 1
      %p44 = por %p42, %p43
      %p45 = scmp.ne.s32.totalorder %s37, %s40
      %p46 = scmp.eq.s32.totalorder %s15, 0
      %p47 = por %p45, %p46
      %p48 = scmp.ne.s32.totalorder %s37, %s40
      %p49 = scmp.eq.s32.totalorder %s20, 1
      %p50 = por %p48, %p49
      %p51 = scmp.ne.s32.totalorder %s40, %s41
      %p52 = scmp.eq.s32.totalorder %s20, 0
      %p53 = por %p51, %p52
      %p54 = scmp.ne.s32.totalorder %s40, %s41
      %p55 = scmp.eq.s32.totalorder %s21, 1
      %p56 = por %p54, %p55
      %p58 = scmp.ne.s32.totalorder %s41, %s57
      %p59 = scmp.eq.s32.totalorder %s21, 0
      %p60 = por %p58, %p59
      %s61 = ssub.s32 %s23, %s30
      %p62 = scmp.eq.s32.totalorder %s61, 0
      %s64 = sadd.s32 %s63, 1
      %s65 = scalar_select %p62, %s63, %s64
      %p68 = pneg %p62
      %p69 = scmp.eq.s32.totalorder %s15, 1
      %p70 = por %p68, %p69
      %p71 = scmp.ne.s32.totalorder %s63, %s66
      %p72 = scmp.eq.s32.totalorder %s15, 0
      %p73 = por %p71, %p72
      %p74 = scmp.ne.s32.totalorder %s63, %s66
      %p75 = scmp.eq.s32.totalorder %s20, 1
      %p76 = por %p74, %p75
      %p77 = scmp.ne.s32.totalorder %s66, %s67
      %p78 = scmp.eq.s32.totalorder %s20, 0
      %p79 = por %p77, %p78
      %p80 = scmp.ne.s32.totalorder %s66, %s67
      %p81 = scmp.eq.s32.totalorder %s21, 1
      %p82 = por %p80, %p81
      %p84 = scmp.ne.s32.totalorder %s67, %s83
      %p85 = scmp.eq.s32.totalorder %s21, 0
      %p86 = por %p84, %p85
      %s87 = ssub.s32 %s22, %s34
      %p88 = scmp.eq.s32.totalorder %s87, 0
      %s90 = sadd.s32 %s89, 1
      %s91 = scalar_select %p88, %s89, %s90
      %p94 = pneg %p88
      %p95 = scmp.eq.s32.totalorder %s15, 1
      %p96 = por %p94, %p95
      %p97 = scmp.ne.s32.totalorder %s89, %s92
      %p98 = scmp.eq.s32.totalorder %s15, 0
      %p99 = por %p97, %p98
      %p100 = scmp.ne.s32.totalorder %s89, %s92
      %p101 = scmp.eq.s32.totalorder %s20, 1
      %p102 = por %p100, %p101
      %p103 = scmp.ne.s32.totalorder %s92, %s93
      %p104 = scmp.eq.s32.totalorder %s20, 0
      %p105 = por %p103, %p104
      %p106 = scmp.ne.s32.totalorder %s92, %s93
      %p107 = scmp.eq.s32.totalorder %s21, 1
      %p108 = por %p106, %p107
      %p110 = scmp.ne.s32.totalorder %s93, %s109
      %p111 = scmp.eq.s32.totalorder %s21, 0
      %p112 = por %p110, %p111
      %p113 = scmp.le.s32.totalorder 1, %s15
      %p114 = scmp.lt.s32.totalorder %s15, 3
      %p115 = pnand %p113, %p114
      %p116 = pneg %p115
      // Predicated region
      $region9: #{tpu_custom_call.1} parent=5 // pred_check
        _
      $region10: #{tpu_custom_call.1} parent=5 // pred_check_branch
        %118 = sbr.rel (%p115) target = $region12
      $region11: #{tpu_custom_call.1} parent=5 // pred_region
        %s119 = ssub.s32 %s15, 1
        // Predicated region
        $region13: #{tpu_custom_call.1} parent=11 // pred_check
          %p120 = pneg %p79
        $region14: #{tpu_custom_call.1} parent=11 // pred_check_branch
          %122 = sbr.rel (%p120) target = $region16
        $region15: #{tpu_custom_call.1} parent=11 // pred_region
          %s123 = smul.u32 2, %s25
          %125 = vsyncadd [#allocation7], 0
          %s126 = smul.addr %s123, 8
          %s127 = scalar_lea.hbm %s1, %s126
          %s128 = sshll.u32 %s127, 4
          %s129 = int_to_ptr.hbm [resolvable:$true] %s128
          %s130 = sshll.u32 [#allocation6], 4
          %s131 = int_to_ptr.vmem [resolvable:$true] %s130
          %136 = dma.hbm_to_vmem [thread:$0]  %s129, 256, %s131, [#allocation7], 128, 128, 8
        $region16: #{tpu_custom_call.1} parent=11 // pred_fallthru
          _
      $region12: #{tpu_custom_call.1} parent=5 // pred_fallthru
        _
      %p137 = scmp.lt.s32.totalorder %s15, 2
      // Predicated region
      $region17: #{tpu_custom_call.1} parent=5 // pred_check
        %p138 = pneg %p137
      $region18: #{tpu_custom_call.1} parent=5 // pred_check_branch
        %140 = sbr.rel (%p138) target = $region20
      $region19: #{tpu_custom_call.1} parent=5 // pred_region
        // Predicated region
        $region21: #{tpu_custom_call.1} parent=19 // pred_check
          %p141 = pneg %p47
        $region22: #{tpu_custom_call.1} parent=19 // pred_check_branch
          %143 = sbr.rel (%p141) target = $region24
        $region23: #{tpu_custom_call.1} parent=19 // pred_region
          %s144 = sand.u32 %s37, 1
          %s145 = scalar_lea.sflag [#allocation4], %s144
          %s146 = sand.u32 %s37, 1
          %s147 = smul.addr %s146, 8
          %s148 = scalar_lea.vmem [#allocation3], %s147
          %150 = vsyncadd %s145, 0
          %s151 = smul.addr %s22, 8
          %s152 = scalar_lea.hbm %s0, %s151
          %s154 = sshll.u32 %s152, 4
          %s155 = int_to_ptr.hbm [resolvable:$true] %s154
          %s156 = sshll.u32 %s148, 4
          %s157 = int_to_ptr.vmem [resolvable:$true] %s156
          %159 = dma.hbm_to_vmem [thread:$0]  %s155, 128, %s157, %s145
        $region24: #{tpu_custom_call.1} parent=19 // pred_fallthru
          _
      $region20: #{tpu_custom_call.1} parent=5 // pred_fallthru
        _
      %p160 = scmp.le.s32.totalorder 1, %s15
      %p161 = scmp.lt.s32.totalorder %s15, 3
      %p162 = pnand %p160, %p161
      %p163 = pneg %p162
      // Predicated region
      $region25: #{tpu_custom_call.1} parent=5 // pred_check
        _
      $region26: #{tpu_custom_call.1} parent=5 // pred_check_branch
        %165 = sbr.rel (%p162) target = $region28
      $region27: #{tpu_custom_call.1} parent=5 // pred_region
        %s166 = ssub.s32 %s15, 1
        %s167 = sand.u32 %s40, 1
        %s168 = scalar_lea.sflag [#allocation4], %s167
        %s169 = sand.u32 %s40, 1
        %s170 = smul.addr %s169, 8
        %s171 = scalar_lea.vmem [#allocation3], %s170
        // Predicated region
        $region29: #{tpu_custom_call.1} parent=27 // pred_check
          %p172 = pneg %p53
        $region30: #{tpu_custom_call.1} parent=27 // pred_check_branch
          %174 = sbr.rel (%p172) target = $region32
        $region31: #{tpu_custom_call.1} parent=27 // pred_region
          %176 = dma.done %s168, 128
        $region32: #{tpu_custom_call.1} parent=27 // pred_fallthru
          _
        // Predicated region
        $region33: #{tpu_custom_call.1} parent=27 // pred_check
          %p177 = pneg %p79
        $region34: #{tpu_custom_call.1} parent=27 // pred_check_branch
          %179 = sbr.rel (%p177) target = $region36
        $region35: #{tpu_custom_call.1} parent=27 // pred_region
          %181 = dma.done [#allocation7], 256
        $region36: #{tpu_custom_call.1} parent=27 // pred_fallthru
          _
        %s182 = sand.u32 %s40, 1
        %s183 = scalar_lea.sflag [#allocation4], %s182
        %s184 = sand.u32 %s40, 1
        %s185 = smul.addr %s184, 8
        %s186 = scalar_lea.vmem [#allocation3], %s185
        %p187 = pneg %p53
        %p188 = pneg %p50
        %p189 = pneg %p79
        %p190 = pneg %p76
        %p191 = pneg %p105
        %p192 = pneg %p102
        %s193 = sand.u32 %s92, 1
        %s194 = scalar_lea.sflag [#allocation5], %s193
        %s195 = sand.u32 %s92, 1
        %s196 = smul.addr %s195, 8
        %s197 = scalar_lea.vmem [#allocation8], %s196
        %s198 = smul.u32 2, %s25
        %p199 = scmp.eq.s32.totalorder %s25, 0
        // Predicated region
        $region37: #{tpu_custom_call.1} parent=27 // pred_check
          %p200 = pneg %p199
        $region38: #{tpu_custom_call.1} parent=27 // pred_check_branch
          %202 = sbr.rel (%p200) target = $region40
        $region39: #{tpu_custom_call.1} parent=27 // pred_region
          %vm203 = vcmask 130048
          %204 = vst.msk [vmem:[#allocation2] sm:$0xff] %vm203, 0.0
        $region40: #{tpu_custom_call.1} parent=27 // pred_fallthru
          _
        %v205 = vld [vmem:[%s171] sm:$0xff]
        %v206 = vld [vmem:[#allocation6] sm:$0xff]
        %v207 = vld [vmem:[#allocation6 + $0x8] sm:$0xff]
        %208 = vmatpush.xpose.msra.mxu0 0.0
        %209 = vmatpush.xpose.msra.mxu0 0.0
        %210 = vmatpush.xpose.msra.mxu0 0.0
        %211 = vmatpush.xpose.msra.mxu0 0.0
        %212 = vmatpush.xpose.msra.mxu0 0.0
        %213 = vmatpush.xpose.msra.mxu0 0.0
        %214 = vmatpush.xpose.msra.mxu0 0.0
        %215 = vmatpush.xpose.msra.mxu0 0.0
        %216 = vmatpush.xpose.msra.mxu0 0.0
        %217 = vmatpush.xpose.msra.mxu0 0.0
        %218 = vmatpush.xpose.msra.mxu0 0.0
        %219 = vmatpush.xpose.msra.mxu0 0.0
        %220 = vmatpush.xpose.msra.mxu0 0.0
        %221 = vmatpush.xpose.msra.mxu0 0.0
        %222 = vmatpush.xpose.msra.mxu0 %v207
        %223 = vmatpush.xpose.msra.mxu0 %v206
        %224 = vmatmul.f32.gmra.mxu0 %v205
        %v225 = vpop.f32.mrf.mxu0
        %v226 = vadd.f32 0.0, %v225
        %227 = vdwg.mxu0
        %v228 = vsub.f32 %v226, 2.0
        %v229 = vmul.f32 %v228, 1.442695
        %v230 = vpow.pop %v229
        %v231 = vld [vmem:[#allocation2] sm:$0xff]
        %v232 = vadd.f32 %v231, %v230
        %vm233 = vcmask 130048
        %234 = vst.msk [vmem:[#allocation2] sm:$0xff] %vm233, %v232
        // Predicated region
        $region41: #{tpu_custom_call.1} parent=27 // pred_check
          %p235 = pneg %p199
        $region42: #{tpu_custom_call.1} parent=27 // pred_check_branch
          %237 = sbr.rel (%p235) target = $region44
        $region43: #{tpu_custom_call.1} parent=27 // pred_region
          %v238 = vld [vmem:[#allocation2] sm:$0xff]
          %v239 = vsel %vm233, %v238, 0.0
          %240 = vadd.xlane.f32.xlu0 %v239
          %v241 = vpop.xlane.xlu0 %240
          %v242 = vsub.f32 %v241, 1.0
          %v243 = vlog2.pop %v242
          %v244 = vmul.f32 %v243, 0.6931472
          %vm245 = vcmask 7168
          %v246 = vsel %vm245, %v244, 0.0
          %247 = vadd.xlane.f32.xlu0 %v246
          %v248 = vpop.xlane.xlu0 %247
          %v249 = vrot.slane %v248, 4
          %v250 = vadd.f32 %v248, %v249
          %v251 = vrot.slane %v250, 2
          %v252 = vadd.f32 %v250, %v251
          %v253 = vrot.slane %v252, 1
          %v254 = vadd.f32 %v252, %v253
          %s255 = vtos %v254
          %v256 = vlaneseq
          %v257 = vshrl.u32 %v256, 7
          %v258 = vlaneseq
          %v259 = vand.u32 %v258, 127
          %vm260 = vcmp.eq.s32.totalorder %v257, 0
          %vm261 = vcmp.eq.s32.totalorder %v259, 0
          %vm262 = vmand %vm260, %vm261
          %v263 = vstv %s255
          %v264 = vsel %vm262, %v263, 0.0
          %265 = vst [vmem:[%s197] sm:$0xff] %v264
        $region44: #{tpu_custom_call.1} parent=27 // pred_fallthru
          _
        %s266 = sand.u32 %s92, 1
        %s267 = scalar_lea.sflag [#allocation5], %s266
        %s268 = sand.u32 %s92, 1
        %s269 = smul.addr %s268, 8
        %s270 = scalar_lea.vmem [#allocation8], %s269
        // Predicated region
        $region45: #{tpu_custom_call.1} parent=27 // pred_check
          %p271 = pneg %p102
        $region46: #{tpu_custom_call.1} parent=27 // pred_check_branch
          %273 = sbr.rel (%p271) target = $region48
        $region47: #{tpu_custom_call.1} parent=27 // pred_region
          %275 = vsyncadd %s267, 0
          %s276 = smul.addr %s24, 8
          %s277 = scalar_lea.hbm %s2, %s276
          %s279 = sshll.u32 %s270, 4
          %s280 = int_to_ptr.vmem [resolvable:$true] %s279
          %s281 = sshll.u32 %s277, 4
          %s282 = int_to_ptr.hbm [resolvable:$true] %s281
          %284 = dma.vmem_to_hbm [thread:$0]  %s280, 128, %s282, %s267
        $region48: #{tpu_custom_call.1} parent=27 // pred_fallthru
          _
      $region28: #{tpu_custom_call.1} parent=5 // pred_fallthru
        _
      %p285 = scmp.le.s32.totalorder 2, %s15
      // Predicated region
      $region49: #{tpu_custom_call.1} parent=5 // pred_check
        %p286 = pneg %p285
      $region50: #{tpu_custom_call.1} parent=5 // pred_check_branch
        %288 = sbr.rel (%p286) target = $region52
      $region51: #{tpu_custom_call.1} parent=5 // pred_region
        %s289 = ssub.s32 %s15, 2
        // Predicated region
        $region53: #{tpu_custom_call.1} parent=51 // pred_check
          %p290 = pneg %p108
        $region54: #{tpu_custom_call.1} parent=51 // pred_check_branch
          %292 = sbr.rel (%p290) target = $region56
        $region55: #{tpu_custom_call.1} parent=51 // pred_region
          %s293 = sand.u32 %s93, 1
          %s294 = scalar_lea.sflag [#allocation5], %s293
          %s295 = sand.u32 %s93, 1
          %s296 = smul.addr %s295, 8
          %s297 = scalar_lea.vmem [#allocation8], %s296
          %299 = dma.done %s294, 128
        $region56: #{tpu_custom_call.1} parent=51 // pred_fallthru
          _
      $region52: #{tpu_custom_call.1} parent=5 // pred_fallthru
        _
    $region6: #{tpu_custom_call.1} parent=1 // loop_footer
      %s19 = sadd.s32 1, %s15
    $region7: #{tpu_custom_call.1} parent=1 // loop_footer_branch
      %14 = sbr.rel target = $region3
    $region8: #{tpu_custom_call.1} parent=1 // loop_exit
      _
    %300 = vsyncpa [#allocation4], 1
    %s301 = scalar_lea.sflag [#allocation4], 1
    %302 = vsyncpa %s301, 1
    %303 = vsyncpa [#allocation7], 1
    %304 = vsyncpa [#allocation5], 1
    %s305 = scalar_lea.sflag [#allocation5], 1
    %306 = vsyncpa %s305, 1

</llo_original>
